<compile_context>
chip_gen: v7x
topology: tpu7x:2x2x1
jax: 0.10.0
libtpu: 0.0.40
codegen_flags: <defaults>
</compile_context>

<pallas_src>
import math

import jax
import jax.numpy as jnp
from jax.experimental import pallas as pl
from jax.experimental.pallas import tpu as pltpu


def _round_up(n, m):
    return ((n + m - 1) // m) * m


def _tpu_vmem_capacity_bytes():
    """Physical VMEM per TensorCore (128 MiB on v5e/v6e, 64 MiB on v7x)."""
    try:
        cap = int(getattr(pltpu.get_tpu_info(), "vmem_capacity_bytes", 0))
        if cap > 0:
            return cap
    except Exception:
        pass
    return 64 << 20  # conservative fallback: assume v7x-sized VMEM


# ---------------------------------------------------------------------------
# Kernels
# ---------------------------------------------------------------------------

def _ffn_resident_kernel(x_ref, w1_ref, b1_ref, w2_ref, b2_ref, o_ref):
    """Both weight matrices resident in VMEM; one X/Y row-tile per grid step."""
    # dense1: (tm, d_in) @ (d_in, H) with fp32 accumulation on the MXU.
    h = jnp.dot(x_ref[...], w1_ref[...], preferred_element_type=jnp.float32)
    # Bias + ReLU epilogue in fp32 on the VPU (v5e has no bf16 VALU).
    h = jnp.maximum(h + b1_ref[...].astype(jnp.float32), 0.0)
    # Cast the activation to the weight dtype so dense2 runs at the weights'
    # MXU rate (bf16 when compute_dtype=bf16); still accumulate in fp32.
    y = jnp.dot(h.astype(w2_ref.dtype), w2_ref[...],
                preferred_element_type=jnp.float32)
    o_ref[...] = (y + b2_ref[...].astype(jnp.float32)).astype(o_ref.dtype)


def _ffn_hblocked_kernel(x_ref, w1_ref, b1_ref, w2_ref, b2_ref, o_ref, acc_ref):
    """Hidden-axis-blocked variant: weights streamed, fp32 accumulator."""
    k = pl.program_id(1)

    @pl.when(k == 0)
    def _():
        acc_ref[...] = jnp.zeros_like(acc_ref)

    h = jnp.dot(x_ref[...], w1_ref[...], preferred_element_type=jnp.float32)
    h = jnp.maximum(h + b1_ref[...].astype(jnp.float32), 0.0)
    acc_ref[...] += jnp.dot(h.astype(w2_ref.dtype), w2_ref[...],
                            preferred_element_type=jnp.float32)

    @pl.when(k == pl.num_programs(1) - 1)
    def _():
        o_ref[...] = (acc_ref[...] + b2_ref[...].astype(jnp.float32)
                      ).astype(o_ref.dtype)


# ---------------------------------------------------------------------------
# Parameter packing (ONE-TIME, not per forward step)
# ---------------------------------------------------------------------------

def prepare_ffn_params(w1, b1, w2, b2, *, compute_dtype=None):
    """Pad the hidden / output feature axes to multiples of 128 (lane-dense
    weight loads and unmasked output stores) and optionally cast weights to a
    lower-precision compute dtype (e.g. bf16) so both matmuls hit the fast MXU
    rate.  Biases are kept fp32 for the fp32 epilogue.

    Weights use (in_features, out_features) layout (transposed vs torch
    nn.Linear), so the kernel computes X @ W + b directly.
    """
    d_in, h = w1.shape
    h2, d_out = w2.shape
    assert h2 == h
    if compute_dtype is None:
        compute_dtype = w1.dtype
    compute_dtype = jnp.dtype(compute_dtype)

    h_p = _round_up(h, 128)
    d_out_p = _round_up(d_out, 128)

    w1_p = w1.astype(compute_dtype)
    w2_p = w2.astype(compute_dtype)
    if h_p != h:
        w1_p = jnp.pad(w1_p, ((0, 0), (0, h_p - h)))
        w2_p = jnp.pad(w2_p, ((0, h_p - h), (0, 0)))
    if d_out_p != d_out:
        w2_p = jnp.pad(w2_p, ((0, 0), (0, d_out_p - d_out)))
    b1_p = jnp.pad(b1.astype(jnp.float32), (0, h_p - h)).reshape(1, h_p)
    b2_p = jnp.pad(b2.astype(jnp.float32), (0, d_out_p - d_out)).reshape(1, d_out_p)

    return dict(w1=w1_p, b1=b1_p, w2=w2_p, b2=b2_p,
                d_in=d_in, h=h, d_out=d_out, h_p=h_p, d_out_p=d_out_p,
                compute_dtype=compute_dtype)


# ---------------------------------------------------------------------------
# Forward
# ---------------------------------------------------------------------------

def position_wise_ffn(x, params, *, tm=None, force_hidden_blocked=False):
    """relu(x @ w1 + b1) @ w2 + b2, params from prepare_ffn_params()."""
    *lead, d_in = x.shape
    assert d_in == params["d_in"], "input feature dim mismatch"
    m = math.prod(lead) if lead else 1

    h_p, d_out_p, d_out = params["h_p"], params["d_out_p"], params["d_out"]
    cdtype = params["compute_dtype"]
    out_dtype = x.dtype

    # X streams straight from HBM: no M padding (partial last tile; rows are
    # independent and OOB rows are never written/used) and no d_in padding
    # (full-extent block on the last axis).  Only a one-shot dtype cast when a
    # lower-precision compute dtype is requested (halves the X HBM stream).
    x2d = x.reshape(m, d_in)
    if x2d.dtype != cdtype:
        x2d = x2d.astype(cdtype)

    c_item = cdtype.itemsize
    o_item = jnp.dtype(out_dtype).itemsize

    vmem_cap = _tpu_vmem_capacity_bytes()
    vmem_budget = int(vmem_cap * 0.6)   # headroom for compiler scratch / spills

    # Token-axis tile: bigger default on 128 MiB parts (v5e/v6e) to amortize
    # per-grid-step overhead, smaller on v7x (64 MiB, 2 TCs).
    if tm is None:
        tm = 1024 if vmem_cap >= (100 << 20) else 512
    tm_eff = max(8, _round_up(min(tm, _round_up(m, 8)), 8))
    grid_m = pl.cdiv(m, tm_eff)
    # v7x megacore: the M axis is "parallel"; avoid a single tile when there
    # is enough work to keep both TensorCores busy.
    if vmem_cap <= (64 << 20) and grid_m == 1 and m > 16:
        tm_eff = max(8, _round_up(pl.cdiv(m, 2), 8))
        grid_m = pl.cdiv(m, tm_eff)

    def _resident_vmem_bytes(n_weight_bufs):
        return (2 * tm_eff * d_in * c_item                       # X tiles (2x)
                + 2 * tm_eff * d_out_p * o_item                   # Y tiles (2x)
                + n_weight_bufs * (d_in * h_p + h_p * d_out_p) * c_item
                + n_weight_bufs * (h_p + d_out_p) * 4             # f32 biases
                + tm_eff * h_p * (4 + c_item)                     # f32 h + cast
                + tm_eff * d_out_p * 4)                           # f32 y

    flops = 2 * m * (d_in * h_p + h_p * d_out_p)
    use_resident = (not force_hidden_blocked
                    and _resident_vmem_bytes(1) <= vmem_budget)

    if use_resident:
        def _call(single_buffer_weights):
            if single_buffer_weights:
                # Constant-index operands: single resident copy instead of the
                # default double-buffering (halves weight VMEM footprint).
                def const_spec(shape):
                    return pl.BlockSpec(shape, lambda i: (0, 0),
                                        pipeline_mode=pl.Buffered(1))
            else:
                def const_spec(shape):
                    return pl.BlockSpec(shape, lambda i: (0, 0))

            n_bufs = 1 if single_buffer_weights else 2
            vmem_limit = int(min(max(_resident_vmem_bytes(n_bufs) * 5 // 4,
                                     4 << 20), vmem_budget))
            cost = pl.CostEstimate(
                flops=flops, transcendentals=0,
                bytes_accessed=(m * d_in * c_item
                                + (d_in * h_p + h_p * d_out_p) * c_item
                                + (h_p + d_out_p) * 4
                                + m * d_out_p * o_item))
            return pl.pallas_call(
                _ffn_resident_kernel,
                out_shape=jax.ShapeDtypeStruct((m, d_out_p), out_dtype),
                grid_spec=pltpu.PrefetchScalarGridSpec(
                    num_scalar_prefetch=0,
                    grid=(grid_m,),
                    in_specs=[
                        # X tile marches along M; weights/biases have constant
                        # block indices -> fetched once, resident in VMEM.
                        pl.BlockSpec((tm_eff, d_in), lambda i: (i, 0)),
                        const_spec((d_in, h_p)),
                        const_spec((1, h_p)),
                        const_spec((h_p, d_out_p)),
                        const_spec((1, d_out_p)),
                    ],
                    out_specs=pl.BlockSpec((tm_eff, d_out_p), lambda i: (i, 0)),
                ),
                compiler_params=pltpu.CompilerParams(
                    dimension_semantics=("parallel",),   # shard M tiles on v7x
                    vmem_limit_bytes=vmem_limit,
                ),
                cost_estimate=cost,
            )(x2d, params["w1"], params["b1"], params["w2"], params["b2"])

        try:
            out = _call(True)
        except Exception:
            # Fallback for jax versions without BlockSpec.pipeline_mode: the
            # weights get default double-buffering (budget recomputed above).
            out = _call(False)
    else:
        # Hidden-blocked fallback (large H / v7x): stream W1/W2 by H blocks,
        # accumulate dense2 partial products in an fp32 VMEM scratch.
        def _hblocked_vmem_bytes(th):
            return (2 * tm_eff * d_in * c_item
                    + 2 * tm_eff * d_out_p * o_item
                    + 2 * (d_in * th + th * d_out_p) * c_item   # streamed W
                    + 2 * (th + d_out_p) * 4
                    + tm_eff * th * (4 + c_item)
                    + tm_eff * d_out_p * 4)                     # acc scratch

        # The H block must divide h_p exactly: a partial reduction block would
        # fold garbage hidden columns into the accumulator.
        n128 = h_p // 128
        th = 128
        for cand in range(min(n128, 32), 0, -1):                # cap block 4096
            if n128 % cand == 0 and _hblocked_vmem_bytes(128 * cand) <= vmem_budget:
                th = 128 * cand
                break
        grid_h = h_p // th

        vmem_limit = int(min(max(_hblocked_vmem_bytes(th) * 5 // 4, 4 << 20),
                             vmem_budget))
        cost = pl.CostEstimate(
            flops=flops, transcendentals=0,
            bytes_accessed=(m * d_in * c_item
                            + grid_m * (d_in * h_p + h_p * d_out_p) * c_item
                            + grid_m * (h_p + d_out_p) * 4
                            + m * d_out_p * o_item))
        out = pl.pallas_call(
            _ffn_hblocked_kernel,
            out_shape=jax.ShapeDtypeStruct((m, d_out_p), out_dtype),
            grid_spec=pltpu.PrefetchScalarGridSpec(
                num_scalar_prefetch=0,
                grid=(grid_m, grid_h),               # reduction (H) axis last
                in_specs=[
                    pl.BlockSpec((tm_eff, d_in), lambda i, k: (i, 0)),
                    pl.BlockSpec((d_in, th), lambda i, k: (0, k)),
                    pl.BlockSpec((1, th), lambda i, k: (0, k)),
                    pl.BlockSpec((th, d_out_p), lambda i, k: (k, 0)),
                    pl.BlockSpec((1, d_out_p), lambda i, k: (0, 0)),
                ],
                out_specs=pl.BlockSpec((tm_eff, d_out_p), lambda i, k: (i, 0)),
                scratch_shapes=[pltpu.VMEM((tm_eff, d_out_p), jnp.float32)],
            ),
            compiler_params=pltpu.CompilerParams(
                dimension_semantics=("parallel", "arbitrary"),
                vmem_limit_bytes=vmem_limit,
            ),
            cost_estimate=cost,
        )(x2d, params["w1"], params["b1"], params["w2"], params["b2"])

    if d_out_p != d_out:
        out = out[:, :d_out]
    return out.reshape(*lead, d_out)


def init_linear_params(key, in_features, out_features, dtype=jnp.float32):
    """Deterministic init mirroring nn.Linear: U(-1/sqrt(fan_in), 1/sqrt(fan_in)).

    Returns weight in (in_features, out_features) layout (transposed vs torch).
    """
    k_w, k_b = jax.random.split(key)
    bound = 1.0 / math.sqrt(in_features)
    w = jax.random.uniform(k_w, (in_features, out_features), dtype,
                           minval=-bound, maxval=bound)
    b = jax.random.uniform(k_b, (out_features,), dtype,
                           minval=-bound, maxval=bound)
    return w, b


if __name__ == "__main__":
    # Module hyper-params (small, consistent with the forward pass).
    batch, seq = 2, 8
    ffn_num_input, ffn_num_hiddens, pw_num_outputs = 16, 32, 16

    key = jax.random.PRNGKey(0)
    k_x, k_l1, k_l2 = jax.random.split(key, 3)

    x = jax.random.normal(k_x, (batch, seq, ffn_num_input), jnp.float32)
    w1, b1 = init_linear_params(k_l1, ffn_num_input, ffn_num_hiddens)
    w2, b2 = init_linear_params(k_l2, ffn_num_hiddens, pw_num_outputs)

    # Pure-JAX reference.
    ref = jnp.maximum(x @ w1 + b1, 0.0) @ w2 + b2

    # One-time parameter packing (fp32 compute dtype).
    params = prepare_ffn_params(w1, b1, w2, b2)

    # Resident-weight path (single M tile at this toy size).
    out = jax.block_until_ready(position_wise_ffn(x, params))
    assert out.shape == (batch, seq, pw_num_outputs)
    assert jnp.allclose(out, ref, atol=1e-5, rtol=1e-5)

    # Multi-tile pipelined path (grid_m > 1), same data.
    out_tiled = jax.block_until_ready(position_wise_ffn(x, params, tm=8))
    assert jnp.allclose(out_tiled, ref, atol=1e-5, rtol=1e-5)

    # Hidden-blocked streaming path (what large-H configs fall back to on v7x).
    out_stream = jax.block_until_ready(
        position_wise_ffn(x, params, tm=8, force_hidden_blocked=True))
    assert jnp.allclose(out_stream, ref, atol=1e-5, rtol=1e-5)

    # bf16 compute-dtype knob (both matmuls at bf16 MXU rate); looser tolerance
    # because weights/activations are truncated to bf16 before the matmuls.
    params_bf16 = prepare_ffn_params(w1, b1, w2, b2, compute_dtype=jnp.bfloat16)
    out_bf16 = jax.block_until_ready(position_wise_ffn(x, params_bf16))
    assert out_bf16.dtype == x.dtype
    assert jnp.allclose(out_bf16, ref, atol=5e-2, rtol=5e-2)

    print("KERNEL_OK")
</pallas_src>

<mosaic_0001>
module attributes {stable_mosaic.version = 11 : i64} {
  func.func @_ffn_resident_kernel(%arg0: i32, %arg1: memref<16x16xf32, #tpu.memory_space<vmem>>, %arg2: memref<16x128xf32, #tpu.memory_space<vmem>>, %arg3: memref<1x128xf32, #tpu.memory_space<vmem>>, %arg4: memref<128x128xf32, #tpu.memory_space<vmem>>, %arg5: memref<1x128xf32, #tpu.memory_space<vmem>>, %arg6: memref<16x128xf32, #tpu.memory_space<vmem>>) attributes {dimension_semantics = [#tpu.dimension_semantics<parallel>], iteration_bounds = array<i64: 1>, scalar_prefetch = 0 : i64, scratch_operands = 0 : i64, tpu.core_type = #tpu.core_type<tc>, window_params = [{transform_indices = @transform_0, window_bounds = array<i64: 16, 16>}, {pipeline_mode = #tpu.pipeline_mode<synchronous>, transform_indices = @transform_1, window_bounds = array<i64: 16, 128>}, {pipeline_mode = #tpu.pipeline_mode<synchronous>, transform_indices = @transform_2, window_bounds = array<i64: 1, 128>}, {pipeline_mode = #tpu.pipeline_mode<synchronous>, transform_indices = @transform_3, window_bounds = array<i64: 128, 128>}, {pipeline_mode = #tpu.pipeline_mode<synchronous>, transform_indices = @transform_4, window_bounds = array<i64: 1, 128>}, {transform_indices = @transform_5, window_bounds = array<i64: 16, 128>}]} {
    %c0 = arith.constant 0 : index
    %c0_0 = arith.constant 0 : index
    %0 = vector.load %arg1[%c0, %c0_0] : memref<16x16xf32, #tpu.memory_space<vmem>>, vector<16x16xf32>
    %c0_1 = arith.constant 0 : index
    %c0_2 = arith.constant 0 : index
    %1 = vector.load %arg2[%c0_1, %c0_2] : memref<16x128xf32, #tpu.memory_space<vmem>>, vector<16x128xf32>
    %cst = arith.constant dense<0.000000e+00> : vector<16x128xf32>
    %2 = tpu.matmul %0, %1, %cst {dimension_numbers = #tpu.dot_dimension_numbers<[1], [0], [0], [1], [0, 0, 1, 1], [], []>} : vector<16x16xf32>, vector<16x128xf32>, vector<16x128xf32> -> vector<16x128xf32>
    %c0_3 = arith.constant 0 : index
    %c0_4 = arith.constant 0 : index
    %3 = vector.load %arg3[%c0_3, %c0_4] : memref<1x128xf32, #tpu.memory_space<vmem>>, vector<1x128xf32>
    %4 = vector.broadcast %3 : vector<1x128xf32> to vector<16x128xf32>
    %5 = arith.addf %2, %4 : vector<16x128xf32>
    %cst_5 = arith.constant 0.000000e+00 : f32
    %6 = vector.broadcast %cst_5 : f32 to vector<16x128xf32>
    %7 = arith.maximumf %5, %6 : vector<16x128xf32>
    %c0_6 = arith.constant 0 : index
    %c0_7 = arith.constant 0 : index
    %8 = vector.load %arg4[%c0_6, %c0_7] : memref<128x128xf32, #tpu.memory_space<vmem>>, vector<128x128xf32>
    %cst_8 = arith.constant dense<0.000000e+00> : vector<16x128xf32>
    %9 = tpu.matmul %7, %8, %cst_8 {dimension_numbers = #tpu.dot_dimension_numbers<[1], [0], [0], [1], [0, 0, 1, 1], [], []>} : vector<16x128xf32>, vector<128x128xf32>, vector<16x128xf32> -> vector<16x128xf32>
    %c0_9 = arith.constant 0 : index
    %c0_10 = arith.constant 0 : index
    %10 = vector.load %arg5[%c0_9, %c0_10] : memref<1x128xf32, #tpu.memory_space<vmem>>, vector<1x128xf32>
    %11 = vector.broadcast %10 : vector<1x128xf32> to vector<16x128xf32>
    %12 = arith.addf %9, %11 : vector<16x128xf32>
    %c0_11 = arith.constant 0 : index
    %c0_12 = arith.constant 0 : index
    %13 = vector.load %arg6[%c0_11, %c0_12] : memref<16x128xf32, #tpu.memory_space<vmem>>, vector<16x128xf32>
    tpu.vector_store %arg6[%c0_11, %c0_12], %12 {strides = array<i32>} : memref<16x128xf32, #tpu.memory_space<vmem>>, vector<16x128xf32>,
    return
  }
  func.func @transform_0(%arg0: i32) -> (i32, i32) {
    %c0_i32 = arith.constant 0 : i32
    %c0_i32_0 = arith.constant 0 : i32
    return %arg0, %c0_i32 : i32, i32
  }
  func.func @transform_1(%arg0: i32) -> (i32, i32) {
    %c0_i32 = arith.constant 0 : i32
    %c0_i32_0 = arith.constant 0 : i32
    %c0_i32_1 = arith.constant 0 : i32
    return %c0_i32, %c0_i32_0 : i32, i32
  }
  func.func @transform_2(%arg0: i32) -> (i32, i32) {
    %c0_i32 = arith.constant 0 : i32
    %c0_i32_0 = arith.constant 0 : i32
    %c0_i32_1 = arith.constant 0 : i32
    return %c0_i32, %c0_i32_0 : i32, i32
  }
  func.func @transform_3(%arg0: i32) -> (i32, i32) {
    %c0_i32 = arith.constant 0 : i32
    %c0_i32_0 = arith.constant 0 : i32
    %c0_i32_1 = arith.constant 0 : i32
    return %c0_i32, %c0_i32_0 : i32, i32
  }
  func.func @transform_4(%arg0: i32) -> (i32, i32) {
    %c0_i32 = arith.constant 0 : i32
    %c0_i32_0 = arith.constant 0 : i32
    %c0_i32_1 = arith.constant 0 : i32
    return %c0_i32, %c0_i32_0 : i32, i32
  }
  func.func @transform_5(%arg0: i32) -> (i32, i32) {
    %c0_i32 = arith.constant 0 : i32
    %c0_i32_0 = arith.constant 0 : i32
    return %arg0, %c0_i32 : i32, i32
  }
}

module attributes {stable_mosaic.version = 11 : i64} {
  func.func @_ffn_resident_kernel(%arg0: i32, %arg1: memref<16x16xf32, #tpu.memory_space<vmem>>, %arg2: memref<16x128xf32, #tpu.memory_space<vmem>>, %arg3: memref<1x128xf32, #tpu.memory_space<vmem>>, %arg4: memref<128x128xf32, #tpu.memory_space<vmem>>, %arg5: memref<1x128xf32, #tpu.memory_space<vmem>>, %arg6: memref<16x128xf32, #tpu.memory_space<vmem>>) attributes {dimension_semantics = [#tpu.dimension_semantics<parallel>], iteration_bounds = array<i64: 1>, scalar_prefetch = 0 : i64, scratch_operands = 0 : i64, tpu.core_type = #tpu.core_type<tc>, window_params = [{transform_indices = @transform_0, window_bounds = array<i64: 16, 16>}, {pipeline_mode = #tpu.pipeline_mode<synchronous>, transform_indices = @transform_1, window_bounds = array<i64: 16, 128>}, {pipeline_mode = #tpu.pipeline_mode<synchronous>, transform_indices = @transform_2, window_bounds = array<i64: 1, 128>}, {pipeline_mode = #tpu.pipeline_mode<synchronous>, transform_indices = @transform_3, window_bounds = array<i64: 128, 128>}, {pipeline_mode = #tpu.pipeline_mode<synchronous>, transform_indices = @transform_4, window_bounds = array<i64: 1, 128>}, {transform_indices = @transform_5, window_bounds = array<i64: 16, 128>}]} {
    %c0 = arith.constant 0 : index
    %c0_0 = arith.constant 0 : index
    %0 = vector.load %arg1[%c0, %c0_0] : memref<16x16xf32, #tpu.memory_space<vmem>>, vector<16x16xf32>
    %c0_1 = arith.constant 0 : index
    %c0_2 = arith.constant 0 : index
    %1 = vector.load %arg2[%c0_1, %c0_2] : memref<16x128xf32, #tpu.memory_space<vmem>>, vector<16x128xf32>
    %cst = arith.constant dense<0.000000e+00> : vector<16x128xf32>
    %2 = tpu.matmul %0, %1, %cst {dimension_numbers = #tpu.dot_dimension_numbers<[1], [0], [0], [1], [0, 0, 1, 1], [], []>} : vector<16x16xf32>, vector<16x128xf32>, vector<16x128xf32> -> vector<16x128xf32>
    %c0_3 = arith.constant 0 : index
    %c0_4 = arith.constant 0 : index
    %3 = vector.load %arg3[%c0_3, %c0_4] : memref<1x128xf32, #tpu.memory_space<vmem>>, vector<1x128xf32>
    %4 = vector.broadcast %3 : vector<1x128xf32> to vector<16x128xf32>
    %5 = arith.addf %2, %4 : vector<16x128xf32>
    %cst_5 = arith.constant 0.000000e+00 : f32
    %6 = vector.broadcast %cst_5 : f32 to vector<16x128xf32>
    %7 = arith.maximumf %5, %6 : vector<16x128xf32>
    %c0_6 = arith.constant 0 : index
    %c0_7 = arith.constant 0 : index
    %8 = vector.load %arg4[%c0_6, %c0_7] : memref<128x128xf32, #tpu.memory_space<vmem>>, vector<128x128xf32>
    %cst_8 = arith.constant dense<0.000000e+00> : vector<16x128xf32>
    %9 = tpu.matmul %7, %8, %cst_8 {dimension_numbers = #tpu.dot_dimension_numbers<[1], [0], [0], [1], [0, 0, 1, 1], [], []>} : vector<16x128xf32>, vector<128x128xf32>, vector<16x128xf32> -> vector<16x128xf32>
    %c0_9 = arith.constant 0 : index
    %c0_10 = arith.constant 0 : index
    %10 = vector.load %arg5[%c0_9, %c0_10] : memref<1x128xf32, #tpu.memory_space<vmem>>, vector<1x128xf32>
    %11 = vector.broadcast %10 : vector<1x128xf32> to vector<16x128xf32>
    %12 = arith.addf %9, %11 : vector<16x128xf32>
    %c0_11 = arith.constant 0 : index
    %c0_12 = arith.constant 0 : index
    %13 = vector.load %arg6[%c0_11, %c0_12] : memref<16x128xf32, #tpu.memory_space<vmem>>, vector<16x128xf32>
    tpu.vector_store %arg6[%c0_11, %c0_12], %12 {strides = array<i32>} : memref<16x128xf32, #tpu.memory_space<vmem>>, vector<16x128xf32>,
    return
  }
  func.func @transform_0(%arg0: i32) -> (i32, i32) {
    %c0_i32 = arith.constant 0 : i32
    %c0_i32_0 = arith.constant 0 : i32
    return %arg0, %c0_i32 : i32, i32
  }
  func.func @transform_1(%arg0: i32) -> (i32, i32) {
    %c0_i32 = arith.constant 0 : i32
    %c0_i32_0 = arith.constant 0 : i32
    %c0_i32_1 = arith.constant 0 : i32
    return %c0_i32, %c0_i32_0 : i32, i32
  }
  func.func @transform_2(%arg0: i32) -> (i32, i32) {
    %c0_i32 = arith.constant 0 : i32
    %c0_i32_0 = arith.constant 0 : i32
    %c0_i32_1 = arith.constant 0 : i32
    return %c0_i32, %c0_i32_0 : i32, i32
  }
  func.func @transform_3(%arg0: i32) -> (i32, i32) {
    %c0_i32 = arith.constant 0 : i32
    %c0_i32_0 = arith.constant 0 : i32
    %c0_i32_1 = arith.constant 0 : i32
    return %c0_i32, %c0_i32_0 : i32, i32
  }
  func.func @transform_4(%arg0: i32) -> (i32, i32) {
    %c0_i32 = arith.constant 0 : i32
    %c0_i32_0 = arith.constant 0 : i32
    %c0_i32_1 = arith.constant 0 : i32
    return %c0_i32, %c0_i32_0 : i32, i32
  }
  func.func @transform_5(%arg0: i32) -> (i32, i32) {
    %c0_i32 = arith.constant 0 : i32
    %c0_i32_0 = arith.constant 0 : i32
    return %arg0, %c0_i32 : i32, i32
  }
}

</mosaic_0001>

<llo_original>
// kernel: tpu_custom_call.1
$region0: #{tpu_custom_call.1}
  #allocation0 [shape = 'u32[]', space=smem, size = 0x4, offset = 0x4, fixed_abs, tag = 'smem constant byte address 0x4 - core index']
  #allocation1 [shape = 'u32[144,128]{1,0:T(1,128)}', space=vmem, size = 0x12000, scoped, tag = 'internal scratch']
  %s0 = inlined_call_operand.hbm [shape: f32[16,16], index: 0, kind: input, shape index: {}]
  %s1 = inlined_call_operand.hbm [shape: f32[16,128], index: 1, kind: input, shape index: {}]
  %s2 = inlined_call_operand.vmem [shape: f32[1,128], index: 2, kind: input, shape index: {}]
  %s3 = inlined_call_operand.hbm [shape: f32[128,128], index: 3, kind: input, shape index: {}]
  %s4 = inlined_call_operand.vmem [shape: f32[1,128], index: 4, kind: input, shape index: {}]
  %s5 = inlined_call_operand.hbm [shape: f32[16,128], index: 5, kind: output, shape index: {}]
  %s6 = sld [smem:[#allocation0]]
  $region42: #{tpu_custom_call.1} parent=0
    _
  %s8 = ssub.s32 1, %s6
  %s9 = scalar_select 0, %s8, %s6
  $region1: #{tpu_custom_call.1} parent=0
    #allocation2 [shape = 'u8[8192]{0}', space=vmem, size = 0x2000, scoped, tag = 'input window, operand 0, single buffered']
    #allocation3 [shape = 's32[1]{0}', space=sflag, size = 0x4, scoped, tag = 'scoped memory for tpu_custom_call.1']
    #allocation4 [shape = 's32[1]{0}', space=sflag, size = 0x4, scoped, tag = 'scoped memory for tpu_custom_call.1']
    #allocation5 [shape = 'u8[8192]{0}', space=vmem, size = 0x2000, scoped, tag = 'input window, operand 1, single buffered']
    #allocation6 [shape = 's32[1]{0}', space=sflag, size = 0x4, scoped, tag = 'scoped memory for tpu_custom_call.1']
    #allocation7 [shape = 'u8[65536]{0}', space=vmem, size = 0x10000, scoped, tag = 'input window, operand 3, single buffered']
    #allocation8 [shape = 'u8[8192]{0}', space=vmem, size = 0x2000, scoped, tag = 'output window, operand 0, single buffered']
    %10 = vsyncpa [#allocation3], 0
    %11 = vsyncpa [#allocation6], 0
    %12 = vsyncpa [#allocation4], 0
    // Predicated region
    $region2: #{tpu_custom_call.1} parent=1 // pred_check
      _
    $region3: #{tpu_custom_call.1} parent=1 // pred_check_branch
      %14 = sbr.rel (0) target = $region5
    $region4: #{tpu_custom_call.1} parent=1 // pred_region
      %s16 = ssub.s32 256, 256
      %17 = vsyncadd [#allocation3], %s16
      %s18 = sshll.u32 [#allocation2], 4
      %s19 = int_to_ptr.vmem [resolvable:$true] %s18
      %24 = dma.hbm_to_vmem [thread:$0]  %s0, 256, %s19, [#allocation3], 128, 128, 8
    $region5: #{tpu_custom_call.1} parent=1 // pred_fallthru
      _
    // Predicated region
    $region6: #{tpu_custom_call.1} parent=1 // pred_check
      _
    $region7: #{tpu_custom_call.1} parent=1 // pred_check_branch
      %26 = sbr.rel (0) target = $region9
    $region8: #{tpu_custom_call.1} parent=1 // pred_region
      %s28 = ssub.s32 256, 256
      %29 = vsyncadd [#allocation6], %s28
      %s30 = sshll.u32 [#allocation5], 4
      %s31 = int_to_ptr.vmem [resolvable:$true] %s30
      %36 = dma.hbm_to_vmem [thread:$0]  %s1, 256, %s31, [#allocation6], 128, 128, 8
    $region9: #{tpu_custom_call.1} parent=1 // pred_fallthru
      _
    // Predicated region
    $region10: #{tpu_custom_call.1} parent=1 // pred_check
      _
    $region11: #{tpu_custom_call.1} parent=1 // pred_check_branch
      %38 = sbr.rel (0) target = $region13
    $region12: #{tpu_custom_call.1} parent=1 // pred_region
      _
    $region13: #{tpu_custom_call.1} parent=1 // pred_fallthru
      _
    // Predicated region
    $region14: #{tpu_custom_call.1} parent=1 // pred_check
      _
    $region15: #{tpu_custom_call.1} parent=1 // pred_check_branch
      %40 = sbr.rel (0) target = $region17
    $region16: #{tpu_custom_call.1} parent=1 // pred_region
      %s42 = ssub.s32 2048, 2048
      %43 = vsyncadd [#allocation6], %s42
      %s44 = sshll.u32 [#allocation7], 4
      %s45 = int_to_ptr.vmem [resolvable:$true] %s44
      %50 = dma.hbm_to_vmem [thread:$0]  %s3, 2048, %s45, [#allocation6], 128, 128, 8
    $region17: #{tpu_custom_call.1} parent=1 // pred_fallthru
      _
    // Predicated region
    $region18: #{tpu_custom_call.1} parent=1 // pred_check
      _
    $region19: #{tpu_custom_call.1} parent=1 // pred_check_branch
      %52 = sbr.rel (0) target = $region21
    $region20: #{tpu_custom_call.1} parent=1 // pred_region
      _
    $region21: #{tpu_custom_call.1} parent=1 // pred_fallthru
      _
    // Predicated region
    $region22: #{tpu_custom_call.1} parent=1 // pred_check
      _
    $region23: #{tpu_custom_call.1} parent=1 // pred_check_branch
      %54 = sbr.rel (0) target = $region25
    $region24: #{tpu_custom_call.1} parent=1 // pred_region
      %55 = dma.done [#allocation3], 256
    $region25: #{tpu_custom_call.1} parent=1 // pred_fallthru
      _
    // Predicated region
    $region26: #{tpu_custom_call.1} parent=1 // pred_check
      _
    $region27: #{tpu_custom_call.1} parent=1 // pred_check_branch
      %57 = sbr.rel (0) target = $region29
    $region28: #{tpu_custom_call.1} parent=1 // pred_region
      %58 = dma.done [#allocation6], 256
    $region29: #{tpu_custom_call.1} parent=1 // pred_fallthru
      _
    // Predicated region
    $region30: #{tpu_custom_call.1} parent=1 // pred_check
      _
    $region31: #{tpu_custom_call.1} parent=1 // pred_check_branch
      %60 = sbr.rel (0) target = $region33
    $region32: #{tpu_custom_call.1} parent=1 // pred_region
      %61 = dma.done [#allocation6], 2048
    $region33: #{tpu_custom_call.1} parent=1 // pred_fallthru
      _
    %v62 = vld [vmem:[#allocation2] sm:$0xff]
    %v63 = vld [vmem:[#allocation2 + $0x8] sm:$0xff]
    %v64 = vld [vmem:[#allocation5] sm:$0xff]
    %v65 = vld [vmem:[#allocation5 + $0x8] sm:$0xff]
    %v66 = vld [vmem:[%s2] sm:$0x1]
    %v68 = vlaneseq
    %v69 = vshrl.u32 %v68, 7
    %v70 = vsub.s32 0, %v69
    %v71 = vrot.slane %v66, %v70
    %vm73 = vcmask 130048
    %v75 = vsel %vm73, %v62, 0
    %v78 = vsel %vm73, %v63, 0
    %80 = vmatprep.subr.mxu0 0.0
    %81 = vmatpush1.msra.mxu0 %v64
    %82 = vmatprep.subr.mxu0 0.0
    %83 = vmatpush1.msra.mxu0 %v65
    %84 = vmatprep.subr.mxu0 0.0
    %85 = vmatpush1.msra.mxu0 0.0
    %86 = vmatprep.subr.mxu0 0.0
    %87 = vmatpush1.msra.mxu0 0.0
    %88 = vmatprep.subr.mxu0 0.0
    %89 = vmatpush1.msra.mxu0 0.0
    %90 = vmatprep.subr.mxu0 0.0
    %91 = vmatpush1.msra.mxu0 0.0
    %92 = vmatprep.subr.mxu0 0.0
    %93 = vmatpush1.msra.mxu0 0.0
    %94 = vmatprep.subr.mxu0 0.0
    %95 = vmatpush1.msra.mxu0 0.0
    %96 = vmatprep.subr.mxu0 0.0
    %97 = vmatpush1.msra.mxu0 0.0
    %98 = vmatprep.subr.mxu0 0.0
    %99 = vmatpush1.msra.mxu0 0.0
    %100 = vmatprep.subr.mxu0 0.0
    %101 = vmatpush1.msra.mxu0 0.0
    %102 = vmatprep.subr.mxu0 0.0
    %103 = vmatpush1.msra.mxu0 0.0
    %104 = vmatprep.subr.mxu0 0.0
    %105 = vmatpush1.msra.mxu0 0.0
    %106 = vmatprep.subr.mxu0 0.0
    %107 = vmatpush1.msra.mxu0 0.0
    %108 = vmatprep.subr.mxu0 0.0
    %109 = vmatpush1.msra.mxu0 0.0
    %110 = vmatprep.subr.mxu0 0.0
    %111 = vmatpush1.msra.mxu0 0.0
    %112 = vmatprep.subr.mxu0 0.0
    %113 = vmatpush1.msra.mxu0 0.0
    %114 = vmatprep.subr.mxu0 0.0
    %115 = vmatpush1.msra.mxu0 0.0
    %116 = vmatprep.subr.mxu0 0.0
    %117 = vmatpush1.msra.mxu0 0.0
    %118 = vmatprep.subr.mxu0 0.0
    %119 = vmatpush1.msra.mxu0 0.0
    %120 = vmatprep.subr.mxu0 0.0
    %121 = vmatpush1.msra.mxu0 0.0
    %122 = vmatprep.subr.mxu0 0.0
    %123 = vmatpush1.msra.mxu0 0.0
    %124 = vmatprep.subr.mxu0 0.0
    %125 = vmatpush1.msra.mxu0 0.0
    %126 = vmatprep.subr.mxu0 0.0
    %127 = vmatpush1.msra.mxu0 0.0
    %128 = vmatprep.subr.mxu0 0.0
    %129 = vmatpush1.msra.mxu0 0.0
    %130 = vmatprep.subr.mxu0 0.0
    %131 = vmatpush1.msra.mxu0 0.0
    %132 = vmatprep.subr.mxu0 0.0
    %133 = vmatpush1.msra.mxu0 0.0
    %134 = vmatprep.subr.mxu0 0.0
    %135 = vmatpush1.msra.mxu0 0.0
    %136 = vmatprep.subr.mxu0 0.0
    %137 = vmatpush1.msra.mxu0 0.0
    %138 = vmatprep.subr.mxu0 0.0
    %139 = vmatpush1.msra.mxu0 0.0
    %140 = vmatprep.subr.mxu0 0.0
    %141 = vmatpush1.msra.mxu0 0.0
    %142 = vmatprep.subr.mxu0 0.0
    %143 = vmatpush1.msra.mxu0 0.0
    %144 = vmatprep.mubr.f32.mxu0 0.0
    %145 = vmatmul.mubr.f32.gmra.mrb[0].mxu0 %v75
    %v146 = vpop.f32.mrb[0].mxu0
    %v147 = vadd.f32 %v71, %v146
    %v148 = vpop.f32.mrb[0].mxu0
    %149 = vmatprep.mubr.f32.mxu0 0.0
    %150 = vmatmul.mubr.f32.gmra.mrb[0].mxu0 %v78
    %v151 = vpop.f32.mrb[0].mxu0
    %v152 = vadd.f32 %v71, %v151
    %v153 = vpop.f32.mrb[0].mxu0
    %154 = vdwg.mxu0
    %v155 = vmax.f32 %v147, 0.0
    %v156 = vmax.f32 %v152, 0.0
    %v157 = vld [vmem:[#allocation7] sm:$0xff]
    %v158 = vld [vmem:[#allocation7 + $0x8] sm:$0xff]
    %v159 = vld [vmem:[#allocation7 + $0x10] sm:$0xff]
    %v160 = vld [vmem:[#allocation7 + $0x18] sm:$0xff]
    %v161 = vld [vmem:[#allocation7 + $0x20] sm:$0xff]
    %v162 = vld [vmem:[#allocation7 + $0x28] sm:$0xff]
    %v163 = vld [vmem:[#allocation7 + $0x30] sm:$0xff]
    %v164 = vld [vmem:[#allocation7 + $0x38] sm:$0xff]
    %v165 = vld [vmem:[#allocation7 + $0x40] sm:$0xff]
    %v166 = vld [vmem:[#allocation7 + $0x48] sm:$0xff]
    %v167 = vld [vmem:[#allocation7 + $0x50] sm:$0xff]
    %v168 = vld [vmem:[#allocation7 + $0x58] sm:$0xff]
    %v169 = vld [vmem:[#allocation7 + $0x60] sm:$0xff]
    %v170 = vld [vmem:[#allocation7 + $0x68] sm:$0xff]
    %v171 = vld [vmem:[#allocation7 + $0x70] sm:$0xff]
    %v172 = vld [vmem:[#allocation7 + $0x78] sm:$0xff]
    %v173 = vld [vmem:[%s4] sm:$0x1]
    %v175 = vlaneseq
    %v176 = vshrl.u32 %v175, 7
    %v177 = vsub.s32 0, %v176
    %v178 = vrot.slane %v173, %v177
    %180 = vmatprep.subr.mxu0 0.0
    %181 = vmatpush1.msra.mxu0 %v157
    %182 = vmatprep.subr.mxu0 0.0
    %183 = vmatpush1.msra.mxu0 %v158
    %184 = vmatprep.subr.mxu0 0.0
    %185 = vmatpush1.msra.mxu0 %v159
    %186 = vmatprep.subr.mxu0 0.0
    %187 = vmatpush1.msra.mxu0 %v160
    %188 = vmatprep.subr.mxu0 0.0
    %189 = vmatpush1.msra.mxu0 %v161
    %190 = vmatprep.subr.mxu0 0.0
    %191 = vmatpush1.msra.mxu0 %v162
    %192 = vmatprep.subr.mxu0 0.0
    %193 = vmatpush1.msra.mxu0 %v163
    %194 = vmatprep.subr.mxu0 0.0
    %195 = vmatpush1.msra.mxu0 %v164
    %196 = vmatprep.subr.mxu0 0.0
    %197 = vmatpush1.msra.mxu0 %v165
    %198 = vmatprep.subr.mxu0 0.0
    %199 = vmatpush1.msra.mxu0 %v166
    %200 = vmatprep.subr.mxu0 0.0
    %201 = vmatpush1.msra.mxu0 %v167
    %202 = vmatprep.subr.mxu0 0.0
    %203 = vmatpush1.msra.mxu0 %v168
    %204 = vmatprep.subr.mxu0 0.0
    %205 = vmatpush1.msra.mxu0 %v169
    %206 = vmatprep.subr.mxu0 0.0
    %207 = vmatpush1.msra.mxu0 %v170
    %208 = vmatprep.subr.mxu0 0.0
    %209 = vmatpush1.msra.mxu0 %v171
    %210 = vmatprep.subr.mxu0 0.0
    %211 = vmatpush1.msra.mxu0 %v172
    %212 = vmatprep.subr.mxu0 0.0
    %213 = vmatpush1.msra.mxu0 0.0
    %214 = vmatprep.subr.mxu0 0.0
    %215 = vmatpush1.msra.mxu0 0.0
    %216 = vmatprep.subr.mxu0 0.0
    %217 = vmatpush1.msra.mxu0 0.0
    %218 = vmatprep.subr.mxu0 0.0
    %219 = vmatpush1.msra.mxu0 0.0
    %220 = vmatprep.subr.mxu0 0.0
    %221 = vmatpush1.msra.mxu0 0.0
    %222 = vmatprep.subr.mxu0 0.0
    %223 = vmatpush1.msra.mxu0 0.0
    %224 = vmatprep.subr.mxu0 0.0
    %225 = vmatpush1.msra.mxu0 0.0
    %226 = vmatprep.subr.mxu0 0.0
    %227 = vmatpush1.msra.mxu0 0.0
    %228 = vmatprep.subr.mxu0 0.0
    %229 = vmatpush1.msra.mxu0 0.0
    %230 = vmatprep.subr.mxu0 0.0
    %231 = vmatpush1.msra.mxu0 0.0
    %232 = vmatprep.subr.mxu0 0.0
    %233 = vmatpush1.msra.mxu0 0.0
    %234 = vmatprep.subr.mxu0 0.0
    %235 = vmatpush1.msra.mxu0 0.0
    %236 = vmatprep.subr.mxu0 0.0
    %237 = vmatpush1.msra.mxu0 0.0
    %238 = vmatprep.subr.mxu0 0.0
    %239 = vmatpush1.msra.mxu0 0.0
    %240 = vmatprep.subr.mxu0 0.0
    %241 = vmatpush1.msra.mxu0 0.0
    %242 = vmatprep.subr.mxu0 0.0
    %243 = vmatpush1.msra.mxu0 0.0
    %244 = vmatprep.mubr.f32.mxu0 0.0
    %245 = vmatmul.mubr.f32.gmra.mrb[0].mxu0 %v155
    %v246 = vpop.f32.mrb[0].mxu0
    %v247 = vadd.f32 %v178, %v246
    %v248 = vpop.f32.mrb[0].mxu0
    %249 = vmatprep.mubr.f32.mxu0 0.0
    %250 = vmatmul.mubr.f32.gmra.mrb[0].mxu0 %v156
    %v251 = vpop.f32.mrb[0].mxu0
    %v252 = vadd.f32 %v178, %v251
    %v253 = vpop.f32.mrb[0].mxu0
    %254 = vdwg.mxu0
    %255 = vst [vmem:[#allocation8] sm:$0xff] %v247
    %256 = vst [vmem:[#allocation8 + $0x8] sm:$0xff] %v252
    // Predicated region
    $region34: #{tpu_custom_call.1} parent=1 // pred_check
      _
    $region35: #{tpu_custom_call.1} parent=1 // pred_check_branch
      %258 = sbr.rel (0) target = $region37
    $region36: #{tpu_custom_call.1} parent=1 // pred_region
      %s260 = ssub.s32 256, 256
      %261 = vsyncadd [#allocation4], %s260
      %s262 = sshll.u32 [#allocation8], 4
      %s263 = int_to_ptr.vmem [resolvable:$true] %s262
      %268 = dma.vmem_to_hbm [thread:$0]  %s263, 256, %s5, [#allocation4], 128, 128, 8
    $region37: #{tpu_custom_call.1} parent=1 // pred_fallthru
      _
    // Predicated region
    $region38: #{tpu_custom_call.1} parent=1 // pred_check
      _
    $region39: #{tpu_custom_call.1} parent=1 // pred_check_branch
      %270 = sbr.rel (0) target = $region41
    $region40: #{tpu_custom_call.1} parent=1 // pred_region
      %271 = dma.done [#allocation4], 256
    $region41: #{tpu_custom_call.1} parent=1 // pred_fallthru
      _
    %272 = vsyncpa [#allocation3], 1
    %273 = vsyncpa [#allocation6], 1
    %274 = vsyncpa [#allocation4], 1

// kernel: tpu_custom_call.1
$region0: #{tpu_custom_call.1}
  #allocation0 [shape = 'u32[]', space=smem, size = 0x4, offset = 0x4, fixed_abs, tag = 'smem constant byte address 0x4 - core index']
  #allocation1 [shape = 'u32[144,128]{1,0:T(1,128)}', space=vmem, size = 0x12000, scoped, tag = 'internal scratch']
  %s0 = inlined_call_operand.hbm [shape: f32[16,16], index: 0, kind: input, shape index: {}]
  %s1 = inlined_call_operand.hbm [shape: f32[16,128], index: 1, kind: input, shape index: {}]
  %s2 = inlined_call_operand.vmem [shape: f32[1,128], index: 2, kind: input, shape index: {}]
  %s3 = inlined_call_operand.hbm [shape: f32[128,128], index: 3, kind: input, shape index: {}]
  %s4 = inlined_call_operand.vmem [shape: f32[1,128], index: 4, kind: input, shape index: {}]
  %s5 = inlined_call_operand.hbm [shape: f32[16,128], index: 5, kind: output, shape index: {}]
  %s6 = sld [smem:[#allocation0]]
  $region42: #{tpu_custom_call.1} parent=0
    _
  %s8 = ssub.s32 1, %s6
  %s9 = scalar_select 0, %s8, %s6
  $region1: #{tpu_custom_call.1} parent=0
    #allocation2 [shape = 'u8[8192]{0}', space=vmem, size = 0x2000, scoped, tag = 'input window, operand 0, single buffered']
    #allocation3 [shape = 's32[1]{0}', space=sflag, size = 0x4, scoped, tag = 'scoped memory for tpu_custom_call.1']
    #allocation4 [shape = 's32[1]{0}', space=sflag, size = 0x4, scoped, tag = 'scoped memory for tpu_custom_call.1']
    #allocation5 [shape = 'u8[8192]{0}', space=vmem, size = 0x2000, scoped, tag = 'input window, operand 1, single buffered']
    #allocation6 [shape = 's32[1]{0}', space=sflag, size = 0x4, scoped, tag = 'scoped memory for tpu_custom_call.1']
    #allocation7 [shape = 'u8[65536]{0}', space=vmem, size = 0x10000, scoped, tag = 'input window, operand 3, single buffered']
    #allocation8 [shape = 'u8[8192]{0}', space=vmem, size = 0x2000, scoped, tag = 'output window, operand 0, single buffered']
    %10 = vsyncpa [#allocation3], 0
    %11 = vsyncpa [#allocation6], 0
    %12 = vsyncpa [#allocation4], 0
    // Predicated region
    $region2: #{tpu_custom_call.1} parent=1 // pred_check
      _
    $region3: #{tpu_custom_call.1} parent=1 // pred_check_branch
      %14 = sbr.rel (0) target = $region5
    $region4: #{tpu_custom_call.1} parent=1 // pred_region
      %s16 = ssub.s32 256, 256
      %17 = vsyncadd [#allocation3], %s16
      %s18 = sshll.u32 [#allocation2], 4
      %s19 = int_to_ptr.vmem [resolvable:$true] %s18
      %24 = dma.hbm_to_vmem [thread:$0]  %s0, 256, %s19, [#allocation3], 128, 128, 8
    $region5: #{tpu_custom_call.1} parent=1 // pred_fallthru
      _
    // Predicated region
    $region6: #{tpu_custom_call.1} parent=1 // pred_check
      _
    $region7: #{tpu_custom_call.1} parent=1 // pred_check_branch
      %26 = sbr.rel (0) target = $region9
    $region8: #{tpu_custom_call.1} parent=1 // pred_region
      %s28 = ssub.s32 256, 256
      %29 = vsyncadd [#allocation6], %s28
      %s30 = sshll.u32 [#allocation5], 4
      %s31 = int_to_ptr.vmem [resolvable:$true] %s30
      %36 = dma.hbm_to_vmem [thread:$0]  %s1, 256, %s31, [#allocation6], 128, 128, 8
    $region9: #{tpu_custom_call.1} parent=1 // pred_fallthru
      _
    // Predicated region
    $region10: #{tpu_custom_call.1} parent=1 // pred_check
      _
    $region11: #{tpu_custom_call.1} parent=1 // pred_check_branch
      %38 = sbr.rel (0) target = $region13
    $region12: #{tpu_custom_call.1} parent=1 // pred_region
      _
    $region13: #{tpu_custom_call.1} parent=1 // pred_fallthru
      _
    // Predicated region
    $region14: #{tpu_custom_call.1} parent=1 // pred_check
      _
    $region15: #{tpu_custom_call.1} parent=1 // pred_check_branch
      %40 = sbr.rel (0) target = $region17
    $region16: #{tpu_custom_call.1} parent=1 // pred_region
      %s42 = ssub.s32 2048, 2048
      %43 = vsyncadd [#allocation6], %s42
      %s44 = sshll.u32 [#allocation7], 4
      %s45 = int_to_ptr.vmem [resolvable:$true] %s44
      %50 = dma.hbm_to_vmem [thread:$0]  %s3, 2048, %s45, [#allocation6], 128, 128, 8
    $region17: #{tpu_custom_call.1} parent=1 // pred_fallthru
      _
    // Predicated region
    $region18: #{tpu_custom_call.1} parent=1 // pred_check
      _
    $region19: #{tpu_custom_call.1} parent=1 // pred_check_branch
      %52 = sbr.rel (0) target = $region21
    $region20: #{tpu_custom_call.1} parent=1 // pred_region
      _
    $region21: #{tpu_custom_call.1} parent=1 // pred_fallthru
      _
    // Predicated region
    $region22: #{tpu_custom_call.1} parent=1 // pred_check
      _
    $region23: #{tpu_custom_call.1} parent=1 // pred_check_branch
      %54 = sbr.rel (0) target = $region25
    $region24: #{tpu_custom_call.1} parent=1 // pred_region
      %55 = dma.done [#allocation3], 256
    $region25: #{tpu_custom_call.1} parent=1 // pred_fallthru
      _
    // Predicated region
    $region26: #{tpu_custom_call.1} parent=1 // pred_check
      _
    $region27: #{tpu_custom_call.1} parent=1 // pred_check_branch
      %57 = sbr.rel (0) target = $region29
    $region28: #{tpu_custom_call.1} parent=1 // pred_region
      %58 = dma.done [#allocation6], 256
    $region29: #{tpu_custom_call.1} parent=1 // pred_fallthru
      _
    // Predicated region
    $region30: #{tpu_custom_call.1} parent=1 // pred_check
      _
    $region31: #{tpu_custom_call.1} parent=1 // pred_check_branch
      %60 = sbr.rel (0) target = $region33
    $region32: #{tpu_custom_call.1} parent=1 // pred_region
      %61 = dma.done [#allocation6], 2048
    $region33: #{tpu_custom_call.1} parent=1 // pred_fallthru
      _
    %v62 = vld [vmem:[#allocation2] sm:$0xff]
    %v63 = vld [vmem:[#allocation2 + $0x8] sm:$0xff]
    %v64 = vld [vmem:[#allocation5] sm:$0xff]
    %v65 = vld [vmem:[#allocation5 + $0x8] sm:$0xff]
    %v66 = vld [vmem:[%s2] sm:$0x1]
    %v68 = vlaneseq
    %v69 = vshrl.u32 %v68, 7
    %v70 = vsub.s32 0, %v69
    %v71 = vrot.slane %v66, %v70
    %vm73 = vcmask 130048
    %v75 = vsel %vm73, %v62, 0
    %v78 = vsel %vm73, %v63, 0
    %80 = vmatprep.subr.mxu0 0.0
    %81 = vmatpush1.msra.mxu0 %v64
    %82 = vmatprep.subr.mxu0 0.0
    %83 = vmatpush1.msra.mxu0 %v65
    %84 = vmatprep.subr.mxu0 0.0
    %85 = vmatpush1.msra.mxu0 0.0
    %86 = vmatprep.subr.mxu0 0.0
    %87 = vmatpush1.msra.mxu0 0.0
    %88 = vmatprep.subr.mxu0 0.0
    %89 = vmatpush1.msra.mxu0 0.0
    %90 = vmatprep.subr.mxu0 0.0
    %91 = vmatpush1.msra.mxu0 0.0
    %92 = vmatprep.subr.mxu0 0.0
    %93 = vmatpush1.msra.mxu0 0.0
    %94 = vmatprep.subr.mxu0 0.0
    %95 = vmatpush1.msra.mxu0 0.0
    %96 = vmatprep.subr.mxu0 0.0
    %97 = vmatpush1.msra.mxu0 0.0
    %98 = vmatprep.subr.mxu0 0.0
    %99 = vmatpush1.msra.mxu0 0.0
    %100 = vmatprep.subr.mxu0 0.0
    %101 = vmatpush1.msra.mxu0 0.0
    %102 = vmatprep.subr.mxu0 0.0
    %103 = vmatpush1.msra.mxu0 0.0
    %104 = vmatprep.subr.mxu0 0.0
    %105 = vmatpush1.msra.mxu0 0.0
    %106 = vmatprep.subr.mxu0 0.0
    %107 = vmatpush1.msra.mxu0 0.0
    %108 = vmatprep.subr.mxu0 0.0
    %109 = vmatpush1.msra.mxu0 0.0
    %110 = vmatprep.subr.mxu0 0.0
    %111 = vmatpush1.msra.mxu0 0.0
    %112 = vmatprep.subr.mxu0 0.0
    %113 = vmatpush1.msra.mxu0 0.0
    %114 = vmatprep.subr.mxu0 0.0
    %115 = vmatpush1.msra.mxu0 0.0
    %116 = vmatprep.subr.mxu0 0.0
    %117 = vmatpush1.msra.mxu0 0.0
    %118 = vmatprep.subr.mxu0 0.0
    %119 = vmatpush1.msra.mxu0 0.0
    %120 = vmatprep.subr.mxu0 0.0
    %121 = vmatpush1.msra.mxu0 0.0
    %122 = vmatprep.subr.mxu0 0.0
    %123 = vmatpush1.msra.mxu0 0.0
    %124 = vmatprep.subr.mxu0 0.0
    %125 = vmatpush1.msra.mxu0 0.0
    %126 = vmatprep.subr.mxu0 0.0
    %127 = vmatpush1.msra.mxu0 0.0
    %128 = vmatprep.subr.mxu0 0.0
    %129 = vmatpush1.msra.mxu0 0.0
    %130 = vmatprep.subr.mxu0 0.0
    %131 = vmatpush1.msra.mxu0 0.0
    %132 = vmatprep.subr.mxu0 0.0
    %133 = vmatpush1.msra.mxu0 0.0
    %134 = vmatprep.subr.mxu0 0.0
    %135 = vmatpush1.msra.mxu0 0.0
    %136 = vmatprep.subr.mxu0 0.0
    %137 = vmatpush1.msra.mxu0 0.0
    %138 = vmatprep.subr.mxu0 0.0
    %139 = vmatpush1.msra.mxu0 0.0
    %140 = vmatprep.subr.mxu0 0.0
    %141 = vmatpush1.msra.mxu0 0.0
    %142 = vmatprep.subr.mxu0 0.0
    %143 = vmatpush1.msra.mxu0 0.0
    %144 = vmatprep.mubr.f32.mxu0 0.0
    %145 = vmatmul.mubr.f32.gmra.mrb[0].mxu0 %v75
    %v146 = vpop.f32.mrb[0].mxu0
    %v147 = vadd.f32 %v71, %v146
    %v148 = vpop.f32.mrb[0].mxu0
    %149 = vmatprep.mubr.f32.mxu0 0.0
    %150 = vmatmul.mubr.f32.gmra.mrb[0].mxu0 %v78
    %v151 = vpop.f32.mrb[0].mxu0
    %v152 = vadd.f32 %v71, %v151
    %v153 = vpop.f32.mrb[0].mxu0
    %154 = vdwg.mxu0
    %v155 = vmax.f32 %v147, 0.0
    %v156 = vmax.f32 %v152, 0.0
    %v157 = vld [vmem:[#allocation7] sm:$0xff]
    %v158 = vld [vmem:[#allocation7 + $0x8] sm:$0xff]
    %v159 = vld [vmem:[#allocation7 + $0x10] sm:$0xff]
    %v160 = vld [vmem:[#allocation7 + $0x18] sm:$0xff]
    %v161 = vld [vmem:[#allocation7 + $0x20] sm:$0xff]
    %v162 = vld [vmem:[#allocation7 + $0x28] sm:$0xff]
    %v163 = vld [vmem:[#allocation7 + $0x30] sm:$0xff]
    %v164 = vld [vmem:[#allocation7 + $0x38] sm:$0xff]
    %v165 = vld [vmem:[#allocation7 + $0x40] sm:$0xff]
    %v166 = vld [vmem:[#allocation7 + $0x48] sm:$0xff]
    %v167 = vld [vmem:[#allocation7 + $0x50] sm:$0xff]
    %v168 = vld [vmem:[#allocation7 + $0x58] sm:$0xff]
    %v169 = vld [vmem:[#allocation7 + $0x60] sm:$0xff]
    %v170 = vld [vmem:[#allocation7 + $0x68] sm:$0xff]
    %v171 = vld [vmem:[#allocation7 + $0x70] sm:$0xff]
    %v172 = vld [vmem:[#allocation7 + $0x78] sm:$0xff]
    %v173 = vld [vmem:[%s4] sm:$0x1]
    %v175 = vlaneseq
    %v176 = vshrl.u32 %v175, 7
    %v177 = vsub.s32 0, %v176
    %v178 = vrot.slane %v173, %v177
    %180 = vmatprep.subr.mxu0 0.0
    %181 = vmatpush1.msra.mxu0 %v157
    %182 = vmatprep.subr.mxu0 0.0
    %183 = vmatpush1.msra.mxu0 %v158
    %184 = vmatprep.subr.mxu0 0.0
    %185 = vmatpush1.msra.mxu0 %v159
    %186 = vmatprep.subr.mxu0 0.0
    %187 = vmatpush1.msra.mxu0 %v160
    %188 = vmatprep.subr.mxu0 0.0
    %189 = vmatpush1.msra.mxu0 %v161
    %190 = vmatprep.subr.mxu0 0.0
    %191 = vmatpush1.msra.mxu0 %v162
    %192 = vmatprep.subr.mxu0 0.0
    %193 = vmatpush1.msra.mxu0 %v163
    %194 = vmatprep.subr.mxu0 0.0
    %195 = vmatpush1.msra.mxu0 %v164
    %196 = vmatprep.subr.mxu0 0.0
    %197 = vmatpush1.msra.mxu0 %v165
    %198 = vmatprep.subr.mxu0 0.0
    %199 = vmatpush1.msra.mxu0 %v166
    %200 = vmatprep.subr.mxu0 0.0
    %201 = vmatpush1.msra.mxu0 %v167
    %202 = vmatprep.subr.mxu0 0.0
    %203 = vmatpush1.msra.mxu0 %v168
    %204 = vmatprep.subr.mxu0 0.0
    %205 = vmatpush1.msra.mxu0 %v169
    %206 = vmatprep.subr.mxu0 0.0
    %207 = vmatpush1.msra.mxu0 %v170
    %208 = vmatprep.subr.mxu0 0.0
    %209 = vmatpush1.msra.mxu0 %v171
    %210 = vmatprep.subr.mxu0 0.0
    %211 = vmatpush1.msra.mxu0 %v172
    %212 = vmatprep.subr.mxu0 0.0
    %213 = vmatpush1.msra.mxu0 0.0
    %214 = vmatprep.subr.mxu0 0.0
    %215 = vmatpush1.msra.mxu0 0.0
    %216 = vmatprep.subr.mxu0 0.0
    %217 = vmatpush1.msra.mxu0 0.0
    %218 = vmatprep.subr.mxu0 0.0
    %219 = vmatpush1.msra.mxu0 0.0
    %220 = vmatprep.subr.mxu0 0.0
    %221 = vmatpush1.msra.mxu0 0.0
    %222 = vmatprep.subr.mxu0 0.0
    %223 = vmatpush1.msra.mxu0 0.0
    %224 = vmatprep.subr.mxu0 0.0
    %225 = vmatpush1.msra.mxu0 0.0
    %226 = vmatprep.subr.mxu0 0.0
    %227 = vmatpush1.msra.mxu0 0.0
    %228 = vmatprep.subr.mxu0 0.0
    %229 = vmatpush1.msra.mxu0 0.0
    %230 = vmatprep.subr.mxu0 0.0
    %231 = vmatpush1.msra.mxu0 0.0
    %232 = vmatprep.subr.mxu0 0.0
    %233 = vmatpush1.msra.mxu0 0.0
    %234 = vmatprep.subr.mxu0 0.0
    %235 = vmatpush1.msra.mxu0 0.0
    %236 = vmatprep.subr.mxu0 0.0
    %237 = vmatpush1.msra.mxu0 0.0
    %238 = vmatprep.subr.mxu0 0.0
    %239 = vmatpush1.msra.mxu0 0.0
    %240 = vmatprep.subr.mxu0 0.0
    %241 = vmatpush1.msra.mxu0 0.0
    %242 = vmatprep.subr.mxu0 0.0
    %243 = vmatpush1.msra.mxu0 0.0
    %244 = vmatprep.mubr.f32.mxu0 0.0
    %245 = vmatmul.mubr.f32.gmra.mrb[0].mxu0 %v155
    %v246 = vpop.f32.mrb[0].mxu0
    %v247 = vadd.f32 %v178, %v246
    %v248 = vpop.f32.mrb[0].mxu0
    %249 = vmatprep.mubr.f32.mxu0 0.0
    %250 = vmatmul.mubr.f32.gmra.mrb[0].mxu0 %v156
    %v251 = vpop.f32.mrb[0].mxu0
    %v252 = vadd.f32 %v178, %v251
    %v253 = vpop.f32.mrb[0].mxu0
    %254 = vdwg.mxu0
    %255 = vst [vmem:[#allocation8] sm:$0xff] %v247
    %256 = vst [vmem:[#allocation8 + $0x8] sm:$0xff] %v252
    // Predicated region
    $region34: #{tpu_custom_call.1} parent=1 // pred_check
      _
    $region35: #{tpu_custom_call.1} parent=1 // pred_check_branch
      %258 = sbr.rel (0) target = $region37
    $region36: #{tpu_custom_call.1} parent=1 // pred_region
      %s260 = ssub.s32 256, 256
      %261 = vsyncadd [#allocation4], %s260
      %s262 = sshll.u32 [#allocation8], 4
      %s263 = int_to_ptr.vmem [resolvable:$true] %s262
      %268 = dma.vmem_to_hbm [thread:$0]  %s263, 256, %s5, [#allocation4], 128, 128, 8
    $region37: #{tpu_custom_call.1} parent=1 // pred_fallthru
      _
    // Predicated region
    $region38: #{tpu_custom_call.1} parent=1 // pred_check
      _
    $region39: #{tpu_custom_call.1} parent=1 // pred_check_branch
      %270 = sbr.rel (0) target = $region41
    $region40: #{tpu_custom_call.1} parent=1 // pred_region
      %271 = dma.done [#allocation4], 256
    $region41: #{tpu_custom_call.1} parent=1 // pred_fallthru
      _
    %272 = vsyncpa [#allocation3], 1
    %273 = vsyncpa [#allocation6], 1
    %274 = vsyncpa [#allocation4], 1

</llo_original>
